<compile_context>
chip_gen: v7x
topology: tpu7x:2x2x1
jax: 0.10.0
libtpu: 0.0.40
codegen_flags: <defaults>
</compile_context>

<pallas_src>
import functools
import math

import jax
import jax.numpy as jnp
from jax import lax
from jax.experimental import pallas as pl
from jax.experimental.pallas import tpu as pltpu


# Per-block-set byte budget (single buffered). BlockSpec double-buffers, so the
# in-flight footprint is ~2x this + headroom: fits v5e/v6e (128 MiB VMEM) and
# v7x (64 MiB VMEM, 32 MiB default scoped) comfortably while giving DMAs that
# are large enough to sit near the HBM roofline on all three generations.
_BLOCK_TARGET_BYTES = 4 << 20


# ---------------------------------------------------------------------------
# small helpers
# ---------------------------------------------------------------------------
def _bce_with_logits(z, p):
    # identical to torch BCEWithLogits (numerically stable form), reduction='none'
    return jnp.maximum(z, 0.0) - z * p + jnp.log1p(jnp.exp(-jnp.abs(z)))


def _robust_reg_from_sq(sq, cs, a):
    # cs**a * ((epe/cs)**2 + 1)**(a/2), with sq = epe**2 (cs, a are trace-time floats)
    if a == 1.0:
        return jnp.sqrt(sq + cs * cs)          # single EUP sqrt per pixel
    if a == 2.0:
        return sq + cs * cs
    return (cs ** a) * (sq * (1.0 / (cs * cs)) + 1.0) ** (a * 0.5)


def _pack_partials(part_ref, values):
    """Pack scalar partial sums into row 0 of a lane-dense (1, 8, 128) block."""
    sub = lax.broadcasted_iota(jnp.int32, (1, 8, 128), 1)
    lane = lax.broadcasted_iota(jnp.int32, (1, 8, 128), 2)
    row0 = sub == 0
    acc = jnp.zeros((1, 8, 128), jnp.float32)
    for k, v in enumerate(values):
        acc = acc + jnp.where(row0 & (lane == k), v, 0.0)
    part_ref[...] = acc


def _vmem_limit(block_bytes):
    """Double-buffered block set + headroom; never below the actual need."""
    need = 2 * block_bytes + (6 << 20)
    return int(max(need, 8 << 20))


def _plan_rows(n, bytes_per_row, target_bytes=_BLOCK_TARGET_BYTES):
    """Plan the (rows, 128) layout for per-pixel kernels.

    Returns (n_pad, tile_rows, n_tiles) with n_pad = n_tiles*tile_rows*128,
    tile_rows a multiple of 8 sized by the byte budget, and >=2 grid steps when
    there is enough data (keeps both v7x TensorCores busy)."""
    rows = -(-n // 128)
    rows8 = -(-rows // 8) * 8
    if rows8 <= 16:
        return rows8 * 128, rows8, 1
    tr = (target_bytes // max(bytes_per_row, 1)) // 8 * 8
    tr = max(8, min(tr, rows8))
    if rows8 // tr < 2 and tr >= 16:
        tr = max(8, (rows8 // 2) // 8 * 8)
    rows_pad = -(-rows // tr) * tr
    return rows_pad * 128, tr, rows_pad // tr


def _plan_lanes(hw, bytes_per_lane, target_bytes=_BLOCK_TARGET_BYTES):
    """Plan the pixel-lane tiling for the gm_cls kernel ((B,C,T) logits blocks)."""
    full_bytes = hw * bytes_per_lane
    if hw <= 128 or full_bytes <= target_bytes:
        if hw % 256 == 0 and full_bytes >= (1 << 20):
            return hw, hw // 2, 2              # 2 grid steps -> both v7x cores
        return hw, hw, 1
    t = max(128, (target_bytes // bytes_per_lane) // 128 * 128)
    t = min(t, (hw // 128) * 128)
    hw_pad = -(-hw // t) * t
    return hw_pad, t, hw_pad // t


def _to_rows(x_flat, n_pad):
    pad = n_pad - x_flat.shape[0]
    if pad:
        x_flat = jnp.pad(x_flat, (0, pad))
    return x_flat.reshape(n_pad // 128, 128)


# ---------------------------------------------------------------------------
# regression kernel (single flow): epe, robust reg loss, certainty BCE
# layout: sublane-dense (rows, 128) planes
# ---------------------------------------------------------------------------
def _regression_kernel(cs, a, n_valid,
                       fx_ref, fy_ref, x2x_ref, x2y_ref, p_ref, z_ref,
                       epe_ref, part_ref):
    fx = fx_ref[...].astype(jnp.float32)
    fy = fy_ref[...].astype(jnp.float32)
    x2x = x2x_ref[...].astype(jnp.float32)
    x2y = x2y_ref[...].astype(jnp.float32)
    p = p_ref[...].astype(jnp.float32)
    z = z_ref[...].astype(jnp.float32)

    dx = fx - x2x
    dy = fy - x2y
    sq = dx * dx + dy * dy
    epe_ref[...] = jnp.sqrt(sq)

    tr, lanes = fx.shape
    row = lax.broadcasted_iota(jnp.int32, (tr, lanes), 0)
    lane = lax.broadcasted_iota(jnp.int32, (tr, lanes), 1)
    valid = ((pl.program_id(0) * tr + row) * lanes + lane) < n_valid

    ce_sum = jnp.sum(jnp.where(valid, _bce_with_logits(z, p), 0.0))
    mask = valid & (p > 0.99)
    reg_sum = jnp.sum(jnp.where(mask, _robust_reg_from_sq(sq, cs, a), 0.0))
    cnt = jnp.sum(mask.astype(jnp.float32))
    _pack_partials(part_ref, (ce_sum, reg_sum, cnt))


def regression_loss_pallas(x2, prob, flow, certainty, cs, a):
    """x2: (B,H,W,2)  prob: (B,H,W)  flow: (B,2,H,W)  certainty: (B,1,H,W)."""
    B, _, H, W = flow.shape
    N = B * H * W
    fx = flow[:, 0].reshape(-1)
    fy = flow[:, 1].reshape(-1)
    x2x = x2[..., 0].reshape(-1)
    x2y = x2[..., 1].reshape(-1)
    p = prob.reshape(-1)
    z = certainty.reshape(-1)

    isz = lambda t: jnp.dtype(t.dtype).itemsize
    bytes_per_row = 128 * (2 * isz(fx) + 2 * isz(x2x) + isz(p) + isz(z) + 4)
    n_pad, TR, nt = _plan_rows(N, bytes_per_row)
    rows = n_pad // 128
    planes = [_to_rows(t, n_pad) for t in (fx, fy, x2x, x2y, p, z)]

    block_bytes = TR * bytes_per_row + 8 * 128 * 4
    kernel = functools.partial(_regression_kernel, float(cs), float(a), N)
    epe, parts = pl.pallas_call(
        kernel,
        grid=(nt,),
        out_shape=(
            jax.ShapeDtypeStruct((rows, 128), jnp.float32),
            jax.ShapeDtypeStruct((nt, 8, 128), jnp.float32),
        ),
        in_specs=[pl.BlockSpec((TR, 128), lambda i: (i, 0))] * 6,
        out_specs=(
            pl.BlockSpec((TR, 128), lambda i: (i, 0)),
            pl.BlockSpec((1, 8, 128), lambda i: (i, 0, 0)),
        ),
        compiler_params=pltpu.CompilerParams(
            dimension_semantics=("parallel",),
            vmem_limit_bytes=_vmem_limit(block_bytes)),
    )(*planes)

    sums = jnp.sum(parts, axis=(0, 1))
    denom = float(N)
    ce_mean = sums[0] / denom
    cnt = sums[2]
    # reg values are strictly > 0 (cs > 0), so torch.any() <=> cnt > 0
    reg_mean = jnp.where(cnt > 0.0, sums[1] / jnp.maximum(cnt, 1.0), 0.0)
    epe_full = epe.reshape(-1)[:N].reshape(B, H, W)
    return ce_mean, reg_mean, epe_full


# ---------------------------------------------------------------------------
# dual regression kernel: gm_flow + flow regression for the same scale fused
# (shares x2 / prob / mask; one pass over HBM)
# ---------------------------------------------------------------------------
def _dual_regression_kernel(cs, a, n_valid,
                            fx_ref, fy_ref, gfx_ref, gfy_ref,
                            x2x_ref, x2y_ref, p_ref, z_ref, gz_ref,
                            epe_ref, part_ref):
    x2x = x2x_ref[...].astype(jnp.float32)
    x2y = x2y_ref[...].astype(jnp.float32)
    p = p_ref[...].astype(jnp.float32)

    tr, lanes = p.shape
    row = lax.broadcasted_iota(jnp.int32, (tr, lanes), 0)
    lane = lax.broadcasted_iota(jnp.int32, (tr, lanes), 1)
    valid = ((pl.program_id(0) * tr + row) * lanes + lane) < n_valid
    mask = valid & (p > 0.99)
    cnt = jnp.sum(mask.astype(jnp.float32))

    # main (refined) flow
    dx = fx_ref[...].astype(jnp.float32) - x2x
    dy = fy_ref[...].astype(jnp.float32) - x2y
    sq = dx * dx + dy * dy
    epe_ref[...] = jnp.sqrt(sq)
    ce_sum = jnp.sum(jnp.where(valid, _bce_with_logits(z_ref[...].astype(jnp.float32), p), 0.0))
    reg_sum = jnp.sum(jnp.where(mask, _robust_reg_from_sq(sq, cs, a), 0.0))

    # global-matcher flow
    gdx = gfx_ref[...].astype(jnp.float32) - x2x
    gdy = gfy_ref[...].astype(jnp.float32) - x2y
    gsq = gdx * gdx + gdy * gdy
    gm_ce_sum = jnp.sum(jnp.where(valid, _bce_with_logits(gz_ref[...].astype(jnp.float32), p), 0.0))
    gm_reg_sum = jnp.sum(jnp.where(mask, _robust_reg_from_sq(gsq, cs, a), 0.0))

    _pack_partials(part_ref, (ce_sum, reg_sum, gm_ce_sum, gm_reg_sum, cnt))


def dual_regression_loss_pallas(x2, prob, flow, certainty, gm_flow, gm_certainty, cs, a):
    B, _, H, W = flow.shape
    N = B * H * W
    fx = flow[:, 0].reshape(-1)
    fy = flow[:, 1].reshape(-1)
    gfx = gm_flow[:, 0].reshape(-1)
    gfy = gm_flow[:, 1].reshape(-1)
    x2x = x2[..., 0].reshape(-1)
    x2y = x2[..., 1].reshape(-1)
    p = prob.reshape(-1)
    z = certainty.reshape(-1)
    gz = gm_certainty.reshape(-1)

    isz = lambda t: jnp.dtype(t.dtype).itemsize
    bytes_per_row = 128 * (isz(fx) + isz(fy) + isz(gfx) + isz(gfy)
                           + isz(x2x) + isz(x2y) + isz(p) + isz(z) + isz(gz) + 4)
    n_pad, TR, nt = _plan_rows(N, bytes_per_row)
    rows = n_pad // 128
    planes = [_to_rows(t, n_pad) for t in (fx, fy, gfx, gfy, x2x, x2y, p, z, gz)]

    block_bytes = TR * bytes_per_row + 8 * 128 * 4
    kernel = functools.partial(_dual_regression_kernel, float(cs), float(a), N)
    epe, parts = pl.pallas_call(
        kernel,
        grid=(nt,),
        out_shape=(
            jax.ShapeDtypeStruct((rows, 128), jnp.float32),
            jax.ShapeDtypeStruct((nt, 8, 128), jnp.float32),
        ),
        in_specs=[pl.BlockSpec((TR, 128), lambda i: (i, 0))] * 9,
        out_specs=(
            pl.BlockSpec((TR, 128), lambda i: (i, 0)),
            pl.BlockSpec((1, 8, 128), lambda i: (i, 0, 0)),
        ),
        compiler_params=pltpu.CompilerParams(
            dimension_semantics=("parallel",),
            vmem_limit_bytes=_vmem_limit(block_bytes)),
    )(*planes)

    sums = jnp.sum(parts, axis=(0, 1))
    denom = float(N)
    ce_mean = sums[0] / denom
    gm_ce_mean = sums[2] / denom
    cnt = sums[4]
    reg_mean = jnp.where(cnt > 0.0, sums[1] / jnp.maximum(cnt, 1.0), 0.0)
    gm_reg_mean = jnp.where(cnt > 0.0, sums[3] / jnp.maximum(cnt, 1.0), 0.0)
    epe_full = epe.reshape(-1)[:N].reshape(B, H, W)
    return gm_ce_mean, gm_reg_mean, ce_mean, reg_mean, epe_full


# ---------------------------------------------------------------------------
# fused gm_cls + regression kernel (per coarse scale):
#   analytic GT cell + cross-entropy + gm-certainty BCE
#   + flow regression + scale-certainty BCE (shares x2 / prob / mask)
# ---------------------------------------------------------------------------
def _gm_fused_kernel(cls_res, cs, a, hw_valid,
                     logits_ref, fx_ref, fy_ref, x2x_ref, x2y_ref,
                     p_ref, gz_ref, z_ref,
                     epe_ref, part_ref):
    x2x = x2x_ref[...].astype(jnp.float32)                 # (B, T)
    x2y = x2y_ref[...].astype(jnp.float32)
    p = p_ref[...].astype(jnp.float32)

    bb, tt = p.shape
    lane = lax.broadcasted_iota(jnp.int32, (bb, tt), 1)
    valid = (pl.program_id(0) * tt + lane) < hw_valid
    mask = valid & (p > 0.99)
    cnt = jnp.sum(mask.astype(jnp.float32))

    # Analytic nearest grid-cell: centers g_k = -1 + (2k+1)/res
    #   -> nearest k = clip(floor((x+1)*res/2), 0, res-1)
    # TODO(synk): exact half-cell-boundary ties break to the higher index here
    #             (torch's argmin picks the lower one) -- measure zero for floats.
    res = float(cls_res)
    jx = jnp.clip(jnp.floor((x2x + 1.0) * (0.5 * res)), 0.0, res - 1.0).astype(jnp.int32)
    iy = jnp.clip(jnp.floor((x2y + 1.0) * (0.5 * res)), 0.0, res - 1.0).astype(jnp.int32)
    gt = iy * cls_res + jx                                  # (B, T)

    logits = logits_ref[...].astype(jnp.float32)            # (B, C, T)
    C = logits.shape[1]
    m = jnp.max(logits, axis=1)                             # (B, T)
    lse = m + jnp.log(jnp.sum(jnp.exp(logits - m[:, None, :]), axis=1))
    cidx = lax.broadcasted_iota(jnp.int32, (1, C, 1), 1)    # tiny; broadcast handles B,T
    logit_gt = jnp.sum(jnp.where(cidx == gt[:, None, :], logits, 0.0), axis=1)
    ce = lse - logit_gt                                     # cross_entropy(reduction='none')
    cls_sum = jnp.sum(jnp.where(mask, ce, 0.0))

    gm_bce_sum = jnp.sum(jnp.where(valid, _bce_with_logits(gz_ref[...].astype(jnp.float32), p), 0.0))

    # flow regression part (shares x2 / prob / mask)
    dx = fx_ref[...].astype(jnp.float32) - x2x
    dy = fy_ref[...].astype(jnp.float32) - x2y
    sq = dx * dx + dy * dy
    epe_ref[...] = jnp.sqrt(sq)

    ce_sum = jnp.sum(jnp.where(valid, _bce_with_logits(z_ref[...].astype(jnp.float32), p), 0.0))
    reg_sum = jnp.sum(jnp.where(mask, _robust_reg_from_sq(sq, cs, a), 0.0))

    _pack_partials(part_ref, (gm_bce_sum, cls_sum, cnt, ce_sum, reg_sum))


def gm_fused_loss_pallas(x2, prob, scale_gm_cls, gm_certainty, flow, certainty, cs, a):
    """x2: (B,H,W,2)  prob: (B,H,W)  scale_gm_cls: (B,C,H,W)
       gm_certainty, certainty: (B,1,H,W)  flow: (B,2,H,W)."""
    B, C, H, W = scale_gm_cls.shape
    HW = H * W
    cls_res = round(math.sqrt(C))

    logits = scale_gm_cls.reshape(B, C, HW)
    fx = flow[:, 0].reshape(B, HW)
    fy = flow[:, 1].reshape(B, HW)
    x2x = x2[..., 0].reshape(B, HW)
    x2y = x2[..., 1].reshape(B, HW)
    p = prob.reshape(B, HW)
    zg = gm_certainty.reshape(B, HW)
    z = certainty.reshape(B, HW)

    isz = lambda t: jnp.dtype(t.dtype).itemsize
    bytes_per_lane = B * (C * isz(logits)
                          + isz(fx) + isz(fy) + isz(x2x) + isz(x2y)
                          + isz(p) + isz(zg) + isz(z) + 4)
    hw_pad, T, nt = _plan_lanes(HW, bytes_per_lane)

    if hw_pad != HW:
        # TODO(synk): padding costs one extra HBM pass over the logits when the
        # pixel count is not tile-divisible; kept explicit so partial tiles never
        # alias previously-visited pixels.
        logits = jnp.pad(logits, ((0, 0), (0, 0), (0, hw_pad - HW)))
        padp = lambda t: jnp.pad(t, ((0, 0), (0, hw_pad - HW)))
        fx, fy, x2x, x2y, p, zg, z = map(padp, (fx, fy, x2x, x2y, p, zg, z))

    block_bytes = T * bytes_per_lane + 8 * 128 * 4
    kernel = functools.partial(_gm_fused_kernel, int(cls_res), float(cs), float(a), HW)
    epe, parts = pl.pallas_call(
        kernel,
        grid=(nt,),
        out_shape=(
            jax.ShapeDtypeStruct((B, hw_pad), jnp.float32),
            jax.ShapeDtypeStruct((nt, 8, 128), jnp.float32),
        ),
        in_specs=[pl.BlockSpec((B, C, T), lambda i: (0, 0, i))]
                 + [pl.BlockSpec((B, T), lambda i: (0, i))] * 7,
        out_specs=(
            pl.BlockSpec((B, T), lambda i: (0, i)),
            pl.BlockSpec((1, 8, 128), lambda i: (i, 0, 0)),
        ),
        compiler_params=pltpu.CompilerParams(
            dimension_semantics=("parallel",),
            vmem_limit_bytes=_vmem_limit(block_bytes)),
    )(logits, fx, fy, x2x, x2y, p, zg, z)

    sums = jnp.sum(parts, axis=(0, 1))
    denom = float(B * HW)
    gm_cert_mean = sums[0] / denom
    cnt = sums[2]
    # CE / reg values > 0, so torch.any() <=> cnt > 0
    gm_cls_mean = jnp.where(cnt > 0.0, sums[1] / jnp.maximum(cnt, 1.0), 0.0)
    ce_mean = sums[3] / denom
    reg_mean = jnp.where(cnt > 0.0, sums[4] / jnp.maximum(cnt, 1.0), 0.0)
    epe_full = epe[:, :HW].reshape(B, H, W)
    return gm_cert_mean, gm_cls_mean, ce_mean, reg_mean, epe_full


# ---------------------------------------------------------------------------
# glue
# ---------------------------------------------------------------------------
def nearest_exact_resize(x, size):
    """x: (B,H,W) -> (B,h,w); matches F.interpolate(..., mode='nearest-exact')."""
    # TODO(synk): boundary-row/col behaviour assumed to match PyTorch 'nearest-exact'.
    B, H, W = x.shape
    h, w = size
    rows = jnp.clip(jnp.floor((jnp.arange(h) + 0.5) * H / h).astype(jnp.int32), 0, H - 1)
    cols = jnp.clip(jnp.floor((jnp.arange(w) + 0.5) * W / w).astype(jnp.int32), 0, W - 1)
    return x[:, rows][:, :, cols]


class RobustLossesDust3rPallas:
    """Pallas/JAX port of RobustLosses_dust3r.forward (loss hot paths in kernels)."""

    def __init__(self, ce_weight=0.01, local_dist=None, local_largest_scale=8,
                 alpha=1.0, c=0.001, _alpha=0.2):
        self.ce_weight = ce_weight
        self.local_dist = local_dist if local_dist is not None else {1: 4.0, 2: 4.0, 4: 4.0, 8: 4.0, 16: 4.0}
        self.local_largest_scale = local_largest_scale
        self.alpha = alpha
        self.c = c
        self._alpha = _alpha

    def _scale_alpha(self, scale):
        return self.alpha[scale] if isinstance(self.alpha, dict) else self.alpha

    def forward(self, corresps, batch):
        scales = list(corresps.keys())
        tot_loss = 0.0
        scale_weights = {1: 1, 2: 1, 4: 1, 8: 1, 16: 1}
        prev_epe = None
        for scale in scales:
            sc = corresps[scale]
            scale_certainty = sc['certainty']
            flow = sc['flow']
            scale_gm_cls = sc.get('gm_cls')
            scale_gm_certainty = sc.get('gm_certainty')
            scale_gm_flow = sc.get('gm_flow')
            delta_cls = sc.get('delta_cls')
            b, _, h, w = scale_certainty.shape
            w_s = scale_weights[scale]

            # TODO(synk): get_gt_warp / get_gt_pts (depth + camera geometry) are external
            # to the loss; per-scale GT warp/prob are supplied in `batch`.
            x2 = batch[scale]['gt_warp']
            prob = batch[scale]['gt_prob']

            if self.local_largest_scale >= scale and prev_epe is not None:
                interp = nearest_exact_resize(prev_epe, (h, w))
                thr = 2.0 / 512.0 * (self.local_dist[scale] * scale)
                prob = prob * (interp < thr).astype(prob.dtype)

            a = self._scale_alpha(scale)
            cs = self.c * scale

            if delta_cls is not None:
                # TODO(synk): delta_cls path (offset_scale / flow_pre_delta shift) not implemented.
                raise NotImplementedError("delta_cls path not implemented")

            if scale_gm_cls is not None:
                gm_cert_l, gm_cls_l, ce, reg, epe = gm_fused_loss_pallas(
                    x2, prob, scale_gm_cls, scale_gm_certainty, flow, scale_certainty, cs, a)
                tot_loss = tot_loss + w_s * (self.ce_weight * gm_cert_l + gm_cls_l)
                tot_loss = tot_loss + w_s * (self.ce_weight * ce + reg)
            elif scale_gm_flow is not None:
                gm_ce, gm_reg, ce, reg, epe = dual_regression_loss_pallas(
                    x2, prob, flow, scale_certainty, scale_gm_flow, scale_gm_certainty, cs, a)
                tot_loss = tot_loss + w_s * (self.ce_weight * gm_ce + gm_reg)
                tot_loss = tot_loss + w_s * (self.ce_weight * ce + reg)
            else:
                ce, reg, epe = regression_loss_pallas(x2, prob, flow, scale_certainty, cs, a)
                tot_loss = tot_loss + w_s * (self.ce_weight * ce + reg)

            # prev_epe = ||flow.permute(0,2,3,1) - x2|| (computed inside the kernel)
            prev_epe = epe

            # TODO(synk): confloss / pts3d path (inv, geotrf, normalize_pointcloud) and
            # wandb / romatch.GLOBAL_STEP logging are external; skipped.
        return tot_loss


if __name__ == "__main__":
    key = jax.random.PRNGKey(0)
    ks = jax.random.split(key, 16)
    B = 2

    # scale 16 (coarse): gm classification head, H=W=4, C=64 (cls_res=8)
    H16 = W16 = 4
    C = 64
    gm_cls = jax.random.normal(ks[0], (B, C, H16, W16), jnp.float32)
    gm_cert16 = jax.random.normal(ks[1], (B, 1, H16, W16), jnp.float32)
    cert16 = jax.random.normal(ks[2], (B, 1, H16, W16), jnp.float32)
    flow16 = jax.random.uniform(ks[3], (B, 2, H16, W16), jnp.float32, -1.0, 1.0)
    warp16 = jax.random.uniform(ks[4], (B, H16, W16, 2), jnp.float32, -1.0, 1.0)
    prob16 = (jax.random.uniform(ks[5], (B, H16, W16)) > 0.5).astype(jnp.float32)

    # scale 4: gm flow (regression) head + refined flow, H=W=8 (dual fused kernel)
    H4 = W4 = 8
    gm_flow4 = jax.random.uniform(ks[6], (B, 2, H4, W4), jnp.float32, -1.0, 1.0)
    gm_cert4 = jax.random.normal(ks[7], (B, 1, H4, W4), jnp.float32)
    cert4 = jax.random.normal(ks[8], (B, 1, H4, W4), jnp.float32)
    warp4 = jax.random.uniform(ks[9], (B, H4, W4, 2), jnp.float32, -1.0, 1.0)
    flow4 = (jnp.transpose(warp4, (0, 3, 1, 2))
             + 0.01 * jax.random.normal(ks[10], (B, 2, H4, W4), jnp.float32))
    prob4 = (jax.random.uniform(ks[11], (B, H4, W4)) > 0.5).astype(jnp.float32)

    # scale 2 (fine): flow regression only, H=W=16
    H2 = W2 = 16
    cert2 = jax.random.normal(ks[12], (B, 1, H2, W2), jnp.float32)
    warp2 = jax.random.uniform(ks[13], (B, H2, W2, 2), jnp.float32, -1.0, 1.0)
    flow2 = (jnp.transpose(warp2, (0, 3, 1, 2))
             + 0.001 * jax.random.normal(ks[14], (B, 2, H2, W2), jnp.float32))
    prob2 = (jax.random.uniform(ks[15], (B, H2, W2)) > 0.5).astype(jnp.float32)

    corresps = {
        16: {'certainty': cert16, 'flow': flow16,
             'gm_cls': gm_cls, 'gm_certainty': gm_cert16},
        4: {'certainty': cert4, 'flow': flow4,
            'gm_flow': gm_flow4, 'gm_certainty': gm_cert4},
        2: {'certainty': cert2, 'flow': flow2},
    }
    batch = {
        16: {'gt_warp': warp16, 'gt_prob': prob16},
        4: {'gt_warp': warp4, 'gt_prob': prob4},
        2: {'gt_warp': warp2, 'gt_prob': prob2},
    }

    loss_fn = RobustLossesDust3rPallas()
    tot = loss_fn.forward(corresps, batch)
    jax.block_until_ready(tot)
    print("KERNEL_OK")
</pallas_src>

<mosaic_0001>
module attributes {stable_mosaic.version = 11 : i64} {
  func.func @_gm_fused_kernel(%arg0: i32, %arg1: memref<2x64x16xf32, #tpu.memory_space<vmem>>, %arg2: memref<2x16xf32, #tpu.memory_space<vmem>>, %arg3: memref<2x16xf32, #tpu.memory_space<vmem>>, %arg4: memref<2x16xf32, #tpu.memory_space<vmem>>, %arg5: memref<2x16xf32, #tpu.memory_space<vmem>>, %arg6: memref<2x16xf32, #tpu.memory_space<vmem>>, %arg7: memref<2x16xf32, #tpu.memory_space<vmem>>, %arg8: memref<2x16xf32, #tpu.memory_space<vmem>>, %arg9: memref<2x16xf32, #tpu.memory_space<vmem>>, %arg10: memref<1x8x128xf32, #tpu.memory_space<vmem>>) attributes {dimension_semantics = [#tpu.dimension_semantics<parallel>], iteration_bounds = array<i64: 1>, scalar_prefetch = 0 : i64, scratch_operands = 0 : i64, tpu.core_type = #tpu.core_type<tc>, window_params = [{transform_indices = @transform_0, window_bounds = array<i64: 2, 64, 16>}, {transform_indices = @transform_1, window_bounds = array<i64: 2, 16>}, {transform_indices = @transform_2, window_bounds = array<i64: 2, 16>}, {transform_indices = @transform_3, window_bounds = array<i64: 2, 16>}, {transform_indices = @transform_4, window_bounds = array<i64: 2, 16>}, {transform_indices = @transform_5, window_bounds = array<i64: 2, 16>}, {transform_indices = @transform_6, window_bounds = array<i64: 2, 16>}, {transform_indices = @transform_7, window_bounds = array<i64: 2, 16>}, {transform_indices = @transform_8, window_bounds = array<i64: 2, 16>}, {transform_indices = @transform_9, window_bounds = array<i64: 1, 8, 128>}]} {
    %c0 = arith.constant 0 : index
    %c0_0 = arith.constant 0 : index
    %0 = vector.load %arg4[%c0, %c0_0] : memref<2x16xf32, #tpu.memory_space<vmem>>, vector<2x16xf32>
    %c0_1 = arith.constant 0 : index
    %c0_2 = arith.constant 0 : index
    %1 = vector.load %arg5[%c0_1, %c0_2] : memref<2x16xf32, #tpu.memory_space<vmem>>, vector<2x16xf32>
    %c0_3 = arith.constant 0 : index
    %c0_4 = arith.constant 0 : index
    %2 = vector.load %arg6[%c0_3, %c0_4] : memref<2x16xf32, #tpu.memory_space<vmem>>, vector<2x16xf32>
    %3 = tpu.iota {dimensions = array<i32: 1>} : vector<2x16xi32>
    %c16_i32 = arith.constant 16 : i32
    %4 = arith.muli %arg0, %c16_i32 : i32
    %5 = vector.broadcast %4 : i32 to vector<2x16xi32>
    %6 = arith.addi %5, %3 : vector<2x16xi32>
    %c16_i32_5 = arith.constant 16 : i32
    %7 = vector.broadcast %c16_i32_5 : i32 to vector<2x16xi32>
    %8 = arith.cmpi slt, %6, %7 : vector<2x16xi32>
    %cst = arith.constant 9.900000e-01 : f32
    %9 = vector.broadcast %cst : f32 to vector<2x16xf32>
    %10 = arith.cmpf ogt, %2, %9 : vector<2x16xf32>
    %11 = arith.andi %8, %10 : vector<2x16xi1>
    %12 = arith.extui %11 : vector<2x16xi1> to vector<2x16xi32>
    %13 = arith.sitofp %12 : vector<2x16xi32> to vector<2x16xf32>
    %14 = vector.shape_cast %13 : vector<2x16xf32> to vector<1x2x16xf32>
    %cst_6 = arith.constant dense<0.000000e+00> : vector<1xf32>
    %15 = vector.multi_reduction <add>, %14, %cst_6 [1, 2] : vector<1x2x16xf32> to vector<1xf32>
    %16 = vector.shape_cast %15 : vector<1xf32> to vector<1x1x1xf32>
    %17 = vector.extract %16[0, 0, 0] : f32 from vector<1x1x1xf32>
    %cst_7 = arith.constant 1.000000e+00 : f32
    %18 = vector.broadcast %cst_7 : f32 to vector<2x16xf32>
    %19 = arith.addf %0, %18 : vector<2x16xf32>
    %cst_8 = arith.constant 4.000000e+00 : f32
    %20 = vector.broadcast %cst_8 : f32 to vector<2x16xf32>
    %21 = arith.mulf %19, %20 : vector<2x16xf32>
    %22 = math.floor %21 : vector<2x16xf32>
    %cst_9 = arith.constant 0.000000e+00 : f32
    %cst_10 = arith.constant 7.000000e+00 : f32
    %23 = vector.broadcast %cst_9 : f32 to vector<2x16xf32>
    %24 = arith.maximumf %23, %22 : vector<2x16xf32>
    %25 = vector.broadcast %cst_10 : f32 to vector<2x16xf32>
    %26 = arith.minimumf %25, %24 : vector<2x16xf32>
    %27 = arith.fptosi %26 : vector<2x16xf32> to vector<2x16xi32>
    %cst_11 = arith.constant 1.000000e+00 : f32
    %28 = vector.broadcast %cst_11 : f32 to vector<2x16xf32>
    %29 = arith.addf %1, %28 : vector<2x16xf32>
    %cst_12 = arith.constant 4.000000e+00 : f32
    %30 = vector.broadcast %cst_12 : f32 to vector<2x16xf32>
    %31 = arith.mulf %29, %30 : vector<2x16xf32>
    %32 = math.floor %31 : vector<2x16xf32>
    %cst_13 = arith.constant 0.000000e+00 : f32
    %cst_14 = arith.constant 7.000000e+00 : f32
    %33 = vector.broadcast %cst_13 : f32 to vector<2x16xf32>
    %34 = arith.maximumf %33, %32 : vector<2x16xf32>
    %35 = vector.broadcast %cst_14 : f32 to vector<2x16xf32>
    %36 = arith.minimumf %35, %34 : vector<2x16xf32>
    %37 = arith.fptosi %36 : vector<2x16xf32> to vector<2x16xi32>
    %c8_i32 = arith.constant 8 : i32
    %38 = vector.broadcast %c8_i32 : i32 to vector<2x16xi32>
    %39 = arith.muli %37, %38 : vector<2x16xi32>
    %40 = arith.addi %39, %27 : vector<2x16xi32>
    %c0_15 = arith.constant 0 : index
    %c0_16 = arith.constant 0 : index
    %c0_17 = arith.constant 0 : index
    %41 = vector.load %arg1[%c0_15, %c0_16, %c0_17] : memref<2x64x16xf32, #tpu.memory_space<vmem>>, vector<2x64x16xf32>
    %cst_18 = arith.constant dense<0xFF800000> : vector<2x16xf32>
    %42 = vector.multi_reduction <maximumf>, %41, %cst_18 [1] : vector<2x64x16xf32> to vector<2x16xf32>
    %43 = vector.shape_cast %42 : vector<2x16xf32> to vector<2x1x16xf32>
    %44 = vector.broadcast %43 : vector<2x1x16xf32> to vector<2x64x16xf32>
    %45 = arith.subf %41, %44 : vector<2x64x16xf32>
    %46 = math.exp %45 : vector<2x64x16xf32>
    %cst_19 = arith.constant dense<0.000000e+00> : vector<2x16xf32>
    %47 = vector.multi_reduction <add>, %46, %cst_19 [1] : vector<2x64x16xf32> to vector<2x16xf32>
    %48 = math.log %47 : vector<2x16xf32>
    %49 = arith.addf %42, %48 : vector<2x16xf32>
    %50 = tpu.iota {dimensions = array<i32: 1>} : vector<1x64x1xi32>
    %51 = vector.shape_cast %40 : vector<2x16xi32> to vector<2x1x16xi32>
    %52 = vector.broadcast %50 : vector<1x64x1xi32> to vector<2x64x16xi32>
    %53 = vector.broadcast %51 : vector<2x1x16xi32> to vector<2x64x16xi32>
    %54 = arith.cmpi eq, %52, %53 : vector<2x64x16xi32>
    %cst_20 = arith.constant 0.000000e+00 : f32
    %55 = vector.broadcast %cst_20 : f32 to vector<2x64x16xf32>
    %56 = arith.select %54, %41, %55 : vector<2x64x16xi1>, vector<2x64x16xf32>
    %cst_21 = arith.constant dense<0.000000e+00> : vector<2x16xf32>
    %57 = vector.multi_reduction <add>, %56, %cst_21 [1] : vector<2x64x16xf32> to vector<2x16xf32>
    %58 = arith.subf %49, %57 : vector<2x16xf32>
    %cst_22 = arith.constant 0.000000e+00 : f32
    %59 = vector.broadcast %cst_22 : f32 to vector<2x16xf32>
    %60 = arith.select %11, %58, %59 : vector<2x16xi1>, vector<2x16xf32>
    %61 = vector.shape_cast %60 : vector<2x16xf32> to vector<1x2x16xf32>
    %cst_23 = arith.constant dense<0.000000e+00> : vector<1xf32>
    %62 = vector.multi_reduction <add>, %61, %cst_23 [1, 2] : vector<1x2x16xf32> to vector<1xf32>
    %63 = vector.shape_cast %62 : vector<1xf32> to vector<1x1x1xf32>
    %64 = vector.extract %63[0, 0, 0] : f32 from vector<1x1x1xf32>
    %c0_24 = arith.constant 0 : index
    %c0_25 = arith.constant 0 : index
    %65 = vector.load %arg7[%c0_24, %c0_25] : memref<2x16xf32, #tpu.memory_space<vmem>>, vector<2x16xf32>
    %cst_26 = arith.constant 0.000000e+00 : f32
    %66 = vector.broadcast %cst_26 : f32 to vector<2x16xf32>
    %67 = arith.maximumf %65, %66 : vector<2x16xf32>
    %68 = arith.mulf %65, %2 : vector<2x16xf32>
    %69 = arith.subf %67, %68 : vector<2x16xf32>
    %70 = math.absf %65 : vector<2x16xf32>
    %cst_27 = arith.constant 0.000000e+00 : f32
    %71 = vector.broadcast %cst_27 : f32 to vector<2x16xf32>
    %72 = arith.subf %71, %70 : vector<2x16xf32>
    %73 = math.exp %72 : vector<2x16xf32>
    %74 = math.log1p %73 : vector<2x16xf32>
    %75 = arith.addf %69, %74 : vector<2x16xf32>
    %cst_28 = arith.constant 0.000000e+00 : f32
    %76 = vector.broadcast %cst_28 : f32 to vector<2x16xf32>
    %77 = arith.select %8, %75, %76 : vector<2x16xi1>, vector<2x16xf32>
    %78 = vector.shape_cast %77 : vector<2x16xf32> to vector<1x2x16xf32>
    %cst_29 = arith.constant dense<0.000000e+00> : vector<1xf32>
    %79 = vector.multi_reduction <add>, %78, %cst_29 [1, 2] : vector<1x2x16xf32> to vector<1xf32>
    %80 = vector.shape_cast %79 : vector<1xf32> to vector<1x1x1xf32>
    %81 = vector.extract %80[0, 0, 0] : f32 from vector<1x1x1xf32>
    %c0_30 = arith.constant 0 : index
    %c0_31 = arith.constant 0 : index
    %82 = vector.load %arg2[%c0_30, %c0_31] : memref<2x16xf32, #tpu.memory_space<vmem>>, vector<2x16xf32>
    %83 = arith.subf %82, %0 : vector<2x16xf32>
    %c0_32 = arith.constant 0 : index
    %c0_33 = arith.constant 0 : index
    %84 = vector.load %arg3[%c0_32, %c0_33] : memref<2x16xf32, #tpu.memory_space<vmem>>, vector<2x16xf32>
    %85 = arith.subf %84, %1 : vector<2x16xf32>
    %86 = arith.mulf %83, %83 : vector<2x16xf32>
    %87 = arith.mulf %85, %85 : vector<2x16xf32>
    %88 = arith.addf %86, %87 : vector<2x16xf32>
    %89 = math.sqrt %88 : vector<2x16xf32>
    %c0_34 = arith.constant 0 : index
    %c0_35 = arith.constant 0 : index
    %90 = vector.load %arg9[%c0_34, %c0_35] : memref<2x16xf32, #tpu.memory_space<vmem>>, vector<2x16xf32>
    tpu.vector_store %arg9[%c0_34, %c0_35], %89 {strides = array<i32>} : memref<2x16xf32, #tpu.memory_space<vmem>>, vector<2x16xf32>,
    %c0_36 = arith.constant 0 : index
    %c0_37 = arith.constant 0 : index
    %91 = vector.load %arg8[%c0_36, %c0_37] : memref<2x16xf32, #tpu.memory_space<vmem>>, vector<2x16xf32>
    %cst_38 = arith.constant 0.000000e+00 : f32
    %92 = vector.broadcast %cst_38 : f32 to vector<2x16xf32>
    %93 = arith.maximumf %91, %92 : vector<2x16xf32>
    %94 = arith.mulf %91, %2 : vector<2x16xf32>
    %95 = arith.subf %93, %94 : vector<2x16xf32>
    %96 = math.absf %91 : vector<2x16xf32>
    %cst_39 = arith.constant 0.000000e+00 : f32
    %97 = vector.broadcast %cst_39 : f32 to vector<2x16xf32>
    %98 = arith.subf %97, %96 : vector<2x16xf32>
    %99 = math.exp %98 : vector<2x16xf32>
    %100 = math.log1p %99 : vector<2x16xf32>
    %101 = arith.addf %95, %100 : vector<2x16xf32>
    %cst_40 = arith.constant 0.000000e+00 : f32
    %102 = vector.broadcast %cst_40 : f32 to vector<2x16xf32>
    %103 = arith.select %8, %101, %102 : vector<2x16xi1>, vector<2x16xf32>
    %104 = vector.shape_cast %103 : vector<2x16xf32> to vector<1x2x16xf32>
    %cst_41 = arith.constant dense<0.000000e+00> : vector<1xf32>
    %105 = vector.multi_reduction <add>, %104, %cst_41 [1, 2] : vector<1x2x16xf32> to vector<1xf32>
    %106 = vector.shape_cast %105 : vector<1xf32> to vector<1x1x1xf32>
    %107 = vector.extract %106[0, 0, 0] : f32 from vector<1x1x1xf32>
    %cst_42 = arith.constant 2.560000e-04 : f32
    %108 = vector.broadcast %cst_42 : f32 to vector<2x16xf32>
    %109 = arith.addf %88, %108 : vector<2x16xf32>
    %110 = math.sqrt %109 : vector<2x16xf32>
    %cst_43 = arith.constant 0.000000e+00 : f32
    %111 = vector.broadcast %cst_43 : f32 to vector<2x16xf32>
    %112 = arith.select %11, %110, %111 : vector<2x16xi1>, vector<2x16xf32>
    %113 = vector.shape_cast %112 : vector<2x16xf32> to vector<1x2x16xf32>
    %cst_44 = arith.constant dense<0.000000e+00> : vector<1xf32>
    %114 = vector.multi_reduction <add>, %113, %cst_44 [1, 2] : vector<1x2x16xf32> to vector<1xf32>
    %115 = vector.shape_cast %114 : vector<1xf32> to vector<1x1x1xf32>
    %116 = vector.extract %115[0, 0, 0] : f32 from vector<1x1x1xf32>
    %117 = tpu.iota {dimensions = array<i32: 1>} : vector<1x8x128xi32>
    %118 = tpu.iota {dimensions = array<i32: 2>} : vector<1x8x128xi32>
    %c0_i32 = arith.constant 0 : i32
    %119 = vector.broadcast %c0_i32 : i32 to vector<1x8x128xi32>
    %120 = arith.cmpi eq, %117, %119 : vector<1x8x128xi32>
    %cst_45 = arith.constant 0.000000e+00 : f32
    %121 = vector.broadcast %cst_45 : f32 to vector<1x8x128xf32>
    %c0_i32_46 = arith.constant 0 : i32
    %122 = vector.broadcast %c0_i32_46 : i32 to vector<1x8x128xi32>
    %123 = arith.cmpi eq, %118, %122 : vector<1x8x128xi32>
    %124 = arith.andi %120, %123 : vector<1x8x128xi1>
    %cst_47 = arith.constant 0.000000e+00 : f32
    %125 = vector.broadcast %81 : f32 to vector<1x8x128xf32>
    %126 = vector.broadcast %cst_47 : f32 to vector<1x8x128xf32>
    %127 = arith.select %124, %125, %126 : vector<1x8x128xi1>, vector<1x8x128xf32>
    %128 = arith.addf %121, %127 : vector<1x8x128xf32>
    %c1_i32 = arith.constant 1 : i32
    %129 = vector.broadcast %c1_i32 : i32 to vector<1x8x128xi32>
    %130 = arith.cmpi eq, %118, %129 : vector<1x8x128xi32>
    %131 = arith.andi %120, %130 : vector<1x8x128xi1>
    %cst_48 = arith.constant 0.000000e+00 : f32
    %132 = vector.broadcast %64 : f32 to vector<1x8x128xf32>
    %133 = vector.broadcast %cst_48 : f32 to vector<1x8x128xf32>
    %134 = arith.select %131, %132, %133 : vector<1x8x128xi1>, vector<1x8x128xf32>
    %135 = arith.addf %128, %134 : vector<1x8x128xf32>
    %c2_i32 = arith.constant 2 : i32
    %136 = vector.broadcast %c2_i32 : i32 to vector<1x8x128xi32>
    %137 = arith.cmpi eq, %118, %136 : vector<1x8x128xi32>
    %138 = arith.andi %120, %137 : vector<1x8x128xi1>
    %cst_49 = arith.constant 0.000000e+00 : f32
    %139 = vector.broadcast %17 : f32 to vector<1x8x128xf32>
    %140 = vector.broadcast %cst_49 : f32 to vector<1x8x128xf32>
    %141 = arith.select %138, %139, %140 : vector<1x8x128xi1>, vector<1x8x128xf32>
    %142 = arith.addf %135, %141 : vector<1x8x128xf32>
    %c3_i32 = arith.constant 3 : i32
    %143 = vector.broadcast %c3_i32 : i32 to vector<1x8x128xi32>
    %144 = arith.cmpi eq, %118, %143 : vector<1x8x128xi32>
    %145 = arith.andi %120, %144 : vector<1x8x128xi1>
    %cst_50 = arith.constant 0.000000e+00 : f32
    %146 = vector.broadcast %107 : f32 to vector<1x8x128xf32>
    %147 = vector.broadcast %cst_50 : f32 to vector<1x8x128xf32>
    %148 = arith.select %145, %146, %147 : vector<1x8x128xi1>, vector<1x8x128xf32>
    %149 = arith.addf %142, %148 : vector<1x8x128xf32>
    %c4_i32 = arith.constant 4 : i32
    %150 = vector.broadcast %c4_i32 : i32 to vector<1x8x128xi32>
    %151 = arith.cmpi eq, %118, %150 : vector<1x8x128xi32>
    %152 = arith.andi %120, %151 : vector<1x8x128xi1>
    %cst_51 = arith.constant 0.000000e+00 : f32
    %153 = vector.broadcast %116 : f32 to vector<1x8x128xf32>
    %154 = vector.broadcast %cst_51 : f32 to vector<1x8x128xf32>
    %155 = arith.select %152, %153, %154 : vector<1x8x128xi1>, vector<1x8x128xf32>
    %156 = arith.addf %149, %155 : vector<1x8x128xf32>
    %c0_52 = arith.constant 0 : index
    %c0_53 = arith.constant 0 : index
    %c0_54 = arith.constant 0 : index
    %157 = vector.load %arg10[%c0_52, %c0_53, %c0_54] : memref<1x8x128xf32, #tpu.memory_space<vmem>>, vector<1x8x128xf32>
    tpu.vector_store %arg10[%c0_52, %c0_53, %c0_54], %156 {strides = array<i32>} : memref<1x8x128xf32, #tpu.memory_space<vmem>>, vector<1x8x128xf32>,
    return
  }
  func.func @transform_0(%arg0: i32) -> (i32, i32, i32) {
    %c0_i32 = arith.constant 0 : i32
    %c0_i32_0 = arith.constant 0 : i32
    %c0_i32_1 = arith.constant 0 : i32
    return %c0_i32, %c0_i32_0, %arg0 : i32, i32, i32
  }
  func.func @transform_1(%arg0: i32) -> (i32, i32) {
    %c0_i32 = arith.constant 0 : i32
    %c0_i32_0 = arith.constant 0 : i32
    return %c0_i32, %arg0 : i32, i32
  }
  func.func @transform_2(%arg0: i32) -> (i32, i32) {
    %c0_i32 = arith.constant 0 : i32
    %c0_i32_0 = arith.constant 0 : i32
    return %c0_i32, %arg0 : i32, i32
  }
  func.func @transform_3(%arg0: i32) -> (i32, i32) {
    %c0_i32 = arith.constant 0 : i32
    %c0_i32_0 = arith.constant 0 : i32
    return %c0_i32, %arg0 : i32, i32
  }
  func.func @transform_4(%arg0: i32) -> (i32, i32) {
    %c0_i32 = arith.constant 0 : i32
    %c0_i32_0 = arith.constant 0 : i32
    return %c0_i32, %arg0 : i32, i32
  }
  func.func @transform_5(%arg0: i32) -> (i32, i32) {
    %c0_i32 = arith.constant 0 : i32
    %c0_i32_0 = arith.constant 0 : i32
    return %c0_i32, %arg0 : i32, i32
  }
  func.func @transform_6(%arg0: i32) -> (i32, i32) {
    %c0_i32 = arith.constant 0 : i32
    %c0_i32_0 = arith.constant 0 : i32
    return %c0_i32, %arg0 : i32, i32
  }
  func.func @transform_7(%arg0: i32) -> (i32, i32) {
    %c0_i32 = arith.constant 0 : i32
    %c0_i32_0 = arith.constant 0 : i32
    return %c0_i32, %arg0 : i32, i32
  }
  func.func @transform_8(%arg0: i32) -> (i32, i32) {
    %c0_i32 = arith.constant 0 : i32
    %c0_i32_0 = arith.constant 0 : i32
    return %c0_i32, %arg0 : i32, i32
  }
  func.func @transform_9(%arg0: i32) -> (i32, i32, i32) {
    %c0_i32 = arith.constant 0 : i32
    %c0_i32_0 = arith.constant 0 : i32
    %c0_i32_1 = arith.constant 0 : i32
    return %arg0, %c0_i32, %c0_i32_0 : i32, i32, i32
  }
}

</mosaic_0001>

<llo_original>
// kernel: tpu_custom_call.1
$region0: #{tpu_custom_call.1}
  #allocation0 [shape = 'u32[]', space=smem, size = 0x4, offset = 0x4, fixed_abs, tag = 'smem constant byte address 0x4 - core index']
  #allocation1 [shape = 'u32[144,128]{1,0:T(1,128)}', space=vmem, size = 0x12000, scoped, tag = 'internal scratch']
  %s0 = inlined_call_operand.vmem [shape: f32[2,64,16], index: 0, kind: input, shape index: {}]
  %s1 = inlined_call_operand.vmem [shape: f32[2,16], index: 1, kind: input, shape index: {}]
  %s2 = inlined_call_operand.vmem [shape: f32[2,16], index: 2, kind: input, shape index: {}]
  %s3 = inlined_call_operand.vmem [shape: f32[2,16], index: 3, kind: input, shape index: {}]
  %s4 = inlined_call_operand.vmem [shape: f32[2,16], index: 4, kind: input, shape index: {}]
  %s5 = inlined_call_operand.vmem [shape: f32[2,16], index: 5, kind: input, shape index: {}]
  %s6 = inlined_call_operand.vmem [shape: f32[2,16], index: 6, kind: input, shape index: {}]
  %s7 = inlined_call_operand.vmem [shape: f32[2,16], index: 7, kind: input, shape index: {}]
  %s8 = inlined_call_operand.hbm [shape: f32[2,16], index: 8, kind: output, shape index: {0}]
  %s9 = inlined_call_operand.hbm [shape: f32[1,8,128], index: 9, kind: output, shape index: {1}]
  %10 = xla_tuple %s8, %s9
  %s11 = sld [smem:[#allocation0]]
  $region50: #{tpu_custom_call.1} parent=0
    _
  %s13 = ssub.s32 1, %s11
  %s14 = scalar_select 0, %s13, %s11
  $region1: #{tpu_custom_call.1} parent=0
    #allocation2 [shape = 'u8[1024]{0}', space=vmem, size = 0x400, scoped, tag = 'output window, operand 0, single buffered']
    #allocation3 [shape = 's32[1]{0}', space=sflag, size = 0x4, scoped, tag = 'scoped memory for tpu_custom_call.1']
    #allocation4 [shape = 'u8[4096]{0}', space=vmem, size = 0x1000, scoped, tag = 'output window, operand 1, single buffered']
    #allocation5 [shape = 's32[1]{0}', space=sflag, size = 0x4, scoped, tag = 'scoped memory for tpu_custom_call.1']
    %15 = vsyncpa [#allocation3], 0
    %16 = vsyncpa [#allocation5], 0
    // Predicated region
    $region2: #{tpu_custom_call.1} parent=1 // pred_check
      _
    $region3: #{tpu_custom_call.1} parent=1 // pred_check_branch
      %18 = sbr.rel (0) target = $region5
    $region4: #{tpu_custom_call.1} parent=1 // pred_region
      _
    $region5: #{tpu_custom_call.1} parent=1 // pred_fallthru
      _
    // Predicated region
    $region6: #{tpu_custom_call.1} parent=1 // pred_check
      _
    $region7: #{tpu_custom_call.1} parent=1 // pred_check_branch
      %20 = sbr.rel (0) target = $region9
    $region8: #{tpu_custom_call.1} parent=1 // pred_region
      _
    $region9: #{tpu_custom_call.1} parent=1 // pred_fallthru
      _
    // Predicated region
    $region10: #{tpu_custom_call.1} parent=1 // pred_check
      _
    $region11: #{tpu_custom_call.1} parent=1 // pred_check_branch
      %22 = sbr.rel (0) target = $region13
    $region12: #{tpu_custom_call.1} parent=1 // pred_region
      _
    $region13: #{tpu_custom_call.1} parent=1 // pred_fallthru
      _
    // Predicated region
    $region14: #{tpu_custom_call.1} parent=1 // pred_check
      _
    $region15: #{tpu_custom_call.1} parent=1 // pred_check_branch
      %24 = sbr.rel (0) target = $region17
    $region16: #{tpu_custom_call.1} parent=1 // pred_region
      _
    $region17: #{tpu_custom_call.1} parent=1 // pred_fallthru
      _
    // Predicated region
    $region18: #{tpu_custom_call.1} parent=1 // pred_check
      _
    $region19: #{tpu_custom_call.1} parent=1 // pred_check_branch
      %26 = sbr.rel (0) target = $region21
    $region20: #{tpu_custom_call.1} parent=1 // pred_region
      _
    $region21: #{tpu_custom_call.1} parent=1 // pred_fallthru
      _
    // Predicated region
    $region22: #{tpu_custom_call.1} parent=1 // pred_check
      _
    $region23: #{tpu_custom_call.1} parent=1 // pred_check_branch
      %28 = sbr.rel (0) target = $region25
    $region24: #{tpu_custom_call.1} parent=1 // pred_region
      _
    $region25: #{tpu_custom_call.1} parent=1 // pred_fallthru
      _
    // Predicated region
    $region26: #{tpu_custom_call.1} parent=1 // pred_check
      _
    $region27: #{tpu_custom_call.1} parent=1 // pred_check_branch
      %30 = sbr.rel (0) target = $region29
    $region28: #{tpu_custom_call.1} parent=1 // pred_region
      _
    $region29: #{tpu_custom_call.1} parent=1 // pred_fallthru
      _
    // Predicated region
    $region30: #{tpu_custom_call.1} parent=1 // pred_check
      _
    $region31: #{tpu_custom_call.1} parent=1 // pred_check_branch
      %32 = sbr.rel (0) target = $region33
    $region32: #{tpu_custom_call.1} parent=1 // pred_region
      _
    $region33: #{tpu_custom_call.1} parent=1 // pred_fallthru
      _
    %v33 = vld [vmem:[%s3] sm:$0x3]
    %v34 = vld [vmem:[%s4] sm:$0x3]
    %v35 = vld [vmem:[%s5] sm:$0x3]
    %v36 = vlaneseq
    %v37 = vand.u32 %v36, 127
    %s38 = smul.u32 0, 16
    %v39 = vstv %s38
    %v40 = vadd.s32 %v39, %v37
    %vm41 = vcmp.lt.s32.totalorder %v40, 16
    %vm42 = vcmp.gt.f32.partialorder %v35, 0.99
    %vm43 = vmand %vm41, %vm42
    %v44 = vsel %vm43, 1, 0
    %v45 = vcvt.s32.f32 %v44
    %vm46 = vcmask 123904
    %v47 = vsel %vm46, %v45, 0.0
    %48 = vadd.xlane.f32.xlu0 %v47
    %v49 = vpop.xlane.xlu0 %48
    %v50 = vrot.slane %v49, 4
    %v51 = vadd.f32 %v49, %v50
    %v52 = vrot.slane %v51, 2
    %v53 = vadd.f32 %v51, %v52
    %v54 = vrot.slane %v53, 1
    %v55 = vadd.f32 %v53, %v54
    %s56 = vtos %v55
    %v57 = vadd.f32 %v33, 1.0
    %v58 = vmul.f32 %v57, 4.0
    %v59 = vfloor.f32 %v58
    %v60 = vmax.f32 %v59, 0.0
    %v61 = vmin.f32 %v60, 7.0
    %v62 = vcvt.f32.s32.to.zero.pseudo %v61
    %v63 = vadd.f32 %v34, 1.0
    %v64 = vmul.f32 %v63, 4.0
    %v65 = vfloor.f32 %v64
    %v66 = vmax.f32 %v65, 0.0
    %v67 = vmin.f32 %v66, 7.0
    %v68 = vcvt.f32.s32.to.zero.pseudo %v67
    %v69 = vmul.u32 %v68, 8
    %v70 = vadd.s32 %v69, %v62
    %v71 = vld [vmem:[%s0] sm:$0xff]
    %v72 = vld [vmem:[%s0 + $0x8] sm:$0xff]
    %v73 = vld [vmem:[%s0 + $0x10] sm:$0xff]
    %v74 = vld [vmem:[%s0 + $0x18] sm:$0xff]
    %v75 = vld [vmem:[%s0 + $0x20] sm:$0xff]
    %v76 = vld [vmem:[%s0 + $0x28] sm:$0xff]
    %v77 = vld [vmem:[%s0 + $0x30] sm:$0xff]
    %v78 = vld [vmem:[%s0 + $0x38] sm:$0xff]
    %v79 = vld [vmem:[%s0 + $0x40] sm:$0xff]
    %v80 = vld [vmem:[%s0 + $0x48] sm:$0xff]
    %v81 = vld [vmem:[%s0 + $0x50] sm:$0xff]
    %v82 = vld [vmem:[%s0 + $0x58] sm:$0xff]
    %v83 = vld [vmem:[%s0 + $0x60] sm:$0xff]
    %v84 = vld [vmem:[%s0 + $0x68] sm:$0xff]
    %v85 = vld [vmem:[%s0 + $0x70] sm:$0xff]
    %v86 = vld [vmem:[%s0 + $0x78] sm:$0xff]
    %vm87 = vcmask 130048
    %v88 = vsel %vm87, %v71, -inf
    %v89 = vsel %vm87, %v72, -inf
    %v90 = vsel %vm87, %v73, -inf
    %v91 = vmax.f32 %v88, %v90
    %v92 = vsel %vm87, %v74, -inf
    %v93 = vmax.f32 %v89, %v92
    %v94 = vsel %vm87, %v75, -inf
    %v95 = vmax.f32 %v91, %v94
    %v96 = vsel %vm87, %v76, -inf
    %v97 = vmax.f32 %v93, %v96
    %v98 = vsel %vm87, %v77, -inf
    %v99 = vmax.f32 %v95, %v98
    %v100 = vsel %vm87, %v78, -inf
    %v101 = vmax.f32 %v97, %v100
    %v102 = vmax.f32 %v99, %v101
    %v103 = vrot.slane %v102, 4
    %v104 = vmax.f32 %v102, %v103
    %v105 = vrot.slane %v104, 2
    %v106 = vmax.f32 %v104, %v105
    %v107 = vrot.slane %v106, 1
    %v108 = vmax.f32 %v106, %v107
    %v109 = vsel %vm87, %v79, -inf
    %v110 = vsel %vm87, %v80, -inf
    %v111 = vsel %vm87, %v81, -inf
    %v112 = vmax.f32 %v109, %v111
    %v113 = vsel %vm87, %v82, -inf
    %v114 = vmax.f32 %v110, %v113
    %v115 = vsel %vm87, %v83, -inf
    %v116 = vmax.f32 %v112, %v115
    %v117 = vsel %vm87, %v84, -inf
    %v118 = vmax.f32 %v114, %v117
    %v119 = vsel %vm87, %v85, -inf
    %v120 = vmax.f32 %v116, %v119
    %v121 = vsel %vm87, %v86, -inf
    %v122 = vmax.f32 %v118, %v121
    %v123 = vmax.f32 %v120, %v122
    %v124 = vrot.slane %v123, 4
    %v125 = vmax.f32 %v123, %v124
    %v126 = vrot.slane %v125, 2
    %v127 = vmax.f32 %v125, %v126
    %v128 = vrot.slane %v127, 1
    %v129 = vmax.f32 %v127, %v128
    %v130 = vsub.f32 %v71, %v108
    %v131 = vsub.f32 %v72, %v108
    %v132 = vsub.f32 %v73, %v108
    %v133 = vsub.f32 %v74, %v108
    %v134 = vsub.f32 %v75, %v108
    %v135 = vsub.f32 %v76, %v108
    %v136 = vsub.f32 %v77, %v108
    %v137 = vsub.f32 %v78, %v108
    %v138 = vsub.f32 %v79, %v129
    %v139 = vsub.f32 %v80, %v129
    %v140 = vsub.f32 %v81, %v129
    %v141 = vsub.f32 %v82, %v129
    %v142 = vsub.f32 %v83, %v129
    %v143 = vsub.f32 %v84, %v129
    %v144 = vsub.f32 %v85, %v129
    %v145 = vsub.f32 %v86, %v129
    %v146 = vmul.f32 %v130, 1.442695
    %v147 = vpow.pop %v146
    %v148 = vmul.f32 %v131, 1.442695
    %v149 = vpow.pop %v148
    %v150 = vmul.f32 %v132, 1.442695
    %v151 = vpow.pop %v150
    %v152 = vmul.f32 %v133, 1.442695
    %v153 = vpow.pop %v152
    %v154 = vmul.f32 %v134, 1.442695
    %v155 = vpow.pop %v154
    %v156 = vmul.f32 %v135, 1.442695
    %v157 = vpow.pop %v156
    %v158 = vmul.f32 %v136, 1.442695
    %v159 = vpow.pop %v158
    %v160 = vmul.f32 %v137, 1.442695
    %v161 = vpow.pop %v160
    %v162 = vmul.f32 %v138, 1.442695
    %v163 = vpow.pop %v162
    %v164 = vmul.f32 %v139, 1.442695
    %v165 = vpow.pop %v164
    %v166 = vmul.f32 %v140, 1.442695
    %v167 = vpow.pop %v166
    %v168 = vmul.f32 %v141, 1.442695
    %v169 = vpow.pop %v168
    %v170 = vmul.f32 %v142, 1.442695
    %v171 = vpow.pop %v170
    %v172 = vmul.f32 %v143, 1.442695
    %v173 = vpow.pop %v172
    %v174 = vmul.f32 %v144, 1.442695
    %v175 = vpow.pop %v174
    %v176 = vmul.f32 %v145, 1.442695
    %v177 = vpow.pop %v176
    %v178 = vsel %vm87, %v147, 0.0
    %v179 = vsel %vm87, %v149, 0.0
    %v180 = vadd.f32 %v178, %v179
    %v181 = vsel %vm87, %v151, 0.0
    %v182 = vadd.f32 %v180, %v181
    %v183 = vsel %vm87, %v153, 0.0
    %v184 = vadd.f32 %v182, %v183
    %v185 = vsel %vm87, %v155, 0.0
    %v186 = vadd.f32 %v184, %v185
    %v187 = vsel %vm87, %v157, 0.0
    %v188 = vadd.f32 %v186, %v187
    %v189 = vsel %vm87, %v159, 0.0
    %v190 = vadd.f32 %v188, %v189
    %v191 = vsel %vm87, %v161, 0.0
    %v192 = vadd.f32 %v190, %v191
    %v193 = vrot.slane %v192, 4
    %v194 = vadd.f32 %v192, %v193
    %v195 = vrot.slane %v194, 2
    %v196 = vadd.f32 %v194, %v195
    %v197 = vrot.slane %v196, 1
    %v198 = vadd.f32 %v196, %v197
    %v199 = vsel %vm87, %v163, 0.0
    %v200 = vsel %vm87, %v165, 0.0
    %v201 = vadd.f32 %v199, %v200
    %v202 = vsel %vm87, %v167, 0.0
    %v203 = vadd.f32 %v201, %v202
    %v204 = vsel %vm87, %v169, 0.0
    %v205 = vadd.f32 %v203, %v204
    %v206 = vsel %vm87, %v171, 0.0
    %v207 = vadd.f32 %v205, %v206
    %v208 = vsel %vm87, %v173, 0.0
    %v209 = vadd.f32 %v207, %v208
    %v210 = vsel %vm87, %v175, 0.0
    %v211 = vadd.f32 %v209, %v210
    %v212 = vsel %vm87, %v177, 0.0
    %v213 = vadd.f32 %v211, %v212
    %v214 = vrot.slane %v213, 4
    %v215 = vadd.f32 %v213, %v214
    %v216 = vrot.slane %v215, 2
    %v217 = vadd.f32 %v215, %v216
    %v218 = vrot.slane %v217, 1
    %v219 = vadd.f32 %v217, %v218
    %v220 = vlog2.pop %v198
    %v221 = vmul.f32 %v220, 0.6931472
    %v222 = vlog2.pop %v219
    %v223 = vmul.f32 %v222, 0.6931472
    %v224 = vadd.f32 %v108, %v221
    %v225 = vadd.f32 %v129, %v223
    %v226 = vlaneseq
    %v227 = vshrl.u32 %v226, 7
    %v228 = vadd.s32 %v227, 8
    %v229 = vadd.s32 %v227, 16
    %v230 = vadd.s32 %v227, 24
    %v231 = vadd.s32 %v227, 32
    %v232 = vadd.s32 %v227, 40
    %v233 = vadd.s32 %v227, 48
    %v234 = vadd.s32 %v227, 56
    %v236 = vunpack.c.l.s4 1966171168
    %v237 = vunpack.c.0.s8 %v236
    %v238 = vlaneseq
    %v239 = vshrl.u32 %v238, 7
    %v240 = vsub.s32 %v237, %v239
    %v241 = vrot.slane %v70, %v240
    %v242 = vcombine.high %v241, %v241
    %v244 = vunpack.c.l.s4 1966171168
    %v245 = vunpack.c.0.s8 %v244
    %v246 = vlaneseq
    %v247 = vshrl.u32 %v246, 7
    %v248 = vsub.s32 %v245, %v247
    %v249 = vrot.slane %v241, %v248
    %v251 = vunpack.c.l.s4 1966171168
    %v252 = vunpack.c.0.s8 %v251
    %v253 = vlaneseq
    %v254 = vshrl.u32 %v253, 7
    %v255 = vsub.s32 %v252, %v254
    %v256 = vrot.slane %v242, %v255
    %v257 = vlaneseq
    %v258 = vshrl.u32 %v257, 7
    %v259 = vsub.s32 0, %v258
    %v260 = vrot.slane %v249, %v259
    %v261 = vlaneseq
    %v262 = vshrl.u32 %v261, 7
    %v263 = vsub.s32 0, %v262
    %v264 = vrot.slane %v256, %v263
    %vm265 = vcmp.eq.s32.totalorder %v227, %v260
    %vm266 = vcmp.eq.s32.totalorder %v228, %v260
    %vm267 = vcmp.eq.s32.totalorder %v229, %v260
    %vm268 = vcmp.eq.s32.totalorder %v230, %v260
    %vm269 = vcmp.eq.s32.totalorder %v231, %v260
    %vm270 = vcmp.eq.s32.totalorder %v232, %v260
    %vm271 = vcmp.eq.s32.totalorder %v233, %v260
    %vm272 = vcmp.eq.s32.totalorder %v234, %v260
    %vm273 = vcmp.eq.s32.totalorder %v227, %v264
    %vm274 = vcmp.eq.s32.totalorder %v228, %v264
    %vm275 = vcmp.eq.s32.totalorder %v229, %v264
    %vm276 = vcmp.eq.s32.totalorder %v230, %v264
    %vm277 = vcmp.eq.s32.totalorder %v231, %v264
    %vm278 = vcmp.eq.s32.totalorder %v232, %v264
    %vm279 = vcmp.eq.s32.totalorder %v233, %v264
    %vm280 = vcmp.eq.s32.totalorder %v234, %v264
    %v281 = vsel %vm265, %v71, 0.0
    %v282 = vsel %vm266, %v72, 0.0
    %v283 = vsel %vm267, %v73, 0.0
    %v284 = vsel %vm268, %v74, 0.0
    %v285 = vsel %vm269, %v75, 0.0
    %v286 = vsel %vm270, %v76, 0.0
    %v287 = vsel %vm271, %v77, 0.0
    %v288 = vsel %vm272, %v78, 0.0
    %v289 = vsel %vm273, %v79, 0.0
    %v290 = vsel %vm274, %v80, 0.0
    %v291 = vsel %vm275, %v81, 0.0
    %v292 = vsel %vm276, %v82, 0.0
    %v293 = vsel %vm277, %v83, 0.0
    %v294 = vsel %vm278, %v84, 0.0
    %v295 = vsel %vm279, %v85, 0.0
    %v296 = vsel %vm280, %v86, 0.0
    %v297 = vsel %vm87, %v281, 0.0
    %v298 = vsel %vm87, %v282, 0.0
    %v299 = vadd.f32 %v297, %v298
    %v300 = vsel %vm87, %v283, 0.0
    %v301 = vadd.f32 %v299, %v300
    %v302 = vsel %vm87, %v284, 0.0
    %v303 = vadd.f32 %v301, %v302
    %v304 = vsel %vm87, %v285, 0.0
    %v305 = vadd.f32 %v303, %v304
    %v306 = vsel %vm87, %v286, 0.0
    %v307 = vadd.f32 %v305, %v306
    %v308 = vsel %vm87, %v287, 0.0
    %v309 = vadd.f32 %v307, %v308
    %v310 = vsel %vm87, %v288, 0.0
    %v311 = vadd.f32 %v309, %v310
    %v312 = vrot.slane %v311, 4
    %v313 = vadd.f32 %v311, %v312
    %v314 = vrot.slane %v313, 2
    %v315 = vadd.f32 %v313, %v314
    %v316 = vrot.slane %v315, 1
    %v317 = vadd.f32 %v315, %v316
    %v318 = vsel %vm87, %v289, 0.0
    %v319 = vsel %vm87, %v290, 0.0
    %v320 = vadd.f32 %v318, %v319
    %v321 = vsel %vm87, %v291, 0.0
    %v322 = vadd.f32 %v320, %v321
    %v323 = vsel %vm87, %v292, 0.0
    %v324 = vadd.f32 %v322, %v323
    %v325 = vsel %vm87, %v293, 0.0
    %v326 = vadd.f32 %v324, %v325
    %v327 = vsel %vm87, %v294, 0.0
    %v328 = vadd.f32 %v326, %v327
    %v329 = vsel %vm87, %v295, 0.0
    %v330 = vadd.f32 %v328, %v329
    %v331 = vsel %vm87, %v296, 0.0
    %v332 = vadd.f32 %v330, %v331
    %v333 = vrot.slane %v332, 4
    %v334 = vadd.f32 %v332, %v333
    %v335 = vrot.slane %v334, 2
    %v336 = vadd.f32 %v334, %v335
    %v337 = vrot.slane %v336, 1
    %v338 = vadd.f32 %v336, %v337
    %v339 = vsub.f32 %v224, %v317
    %v340 = vsub.f32 %v225, %v338
    %vm343 = vcmask 1041409
    %v344 = vsel %vm343, %v340, %v339
    %v346 = vsel %vm43, %v344, 0.0
    %v347 = vsel %vm46, %v346, 0.0
    %348 = vadd.xlane.f32.xlu0 %v347
    %v349 = vpop.xlane.xlu0 %348
    %v350 = vrot.slane %v349, 4
    %v351 = vadd.f32 %v349, %v350
    %v352 = vrot.slane %v351, 2
    %v353 = vadd.f32 %v351, %v352
    %v354 = vrot.slane %v353, 1
    %v355 = vadd.f32 %v353, %v354
    %s356 = vtos %v355
    %v357 = vld [vmem:[%s6] sm:$0x3]
    %v358 = vmax.f32 %v357, 0.0
    %v359 = vmul.f32 %v357, %v35
    %v360 = vsub.f32 %v358, %v359
    %v361 = vand.u32 2147483647, %v357
    %v362 = vsub.f32 0.0, %v361
    %v363 = vmul.f32 %v362, 1.442695
    %v364 = vpow.pop %v363
    %v365 = vadd.f32 %v364, 1.0
    %v366 = vlog2.pop %v365
    %v367 = vmul.f32 %v366, 0.6931472
    %v368 = vmul.f32 -0.5, %v364
    %v369 = vadd.f32 %v368, 1.0
    %v370 = vmul.f32 %v369, %v364
    %v371 = vand.u32 2147483647, %v364
    %vm372 = vcmp.lt.f32.partialorder %v371, 0.0004427343
    %v373 = vsel %vm372, %v370, %v367
    %v374 = vadd.f32 %v360, %v373
    %v375 = vsel %vm41, %v374, 0.0
    %v376 = vsel %vm46, %v375, 0.0
    %377 = vadd.xlane.f32.xlu0 %v376
    %v378 = vpop.xlane.xlu0 %377
    %v379 = vrot.slane %v378, 4
    %v380 = vadd.f32 %v378, %v379
    %v381 = vrot.slane %v380, 2
    %v382 = vadd.f32 %v380, %v381
    %v383 = vrot.slane %v382, 1
    %v384 = vadd.f32 %v382, %v383
    %s385 = vtos %v384
    %v386 = vld [vmem:[%s1] sm:$0x3]
    %v387 = vsub.f32 %v386, %v33
    %v388 = vld [vmem:[%s2] sm:$0x3]
    %v389 = vsub.f32 %v388, %v34
    %v390 = vmul.f32 %v387, %v387
    %v391 = vmul.f32 %v389, %v389
    %v392 = vadd.f32 %v390, %v391
    %v393 = vrsqrt.pop %v392
    %v394 = vmul.f32 %v392, %v393
    %vm395 = vcmp.eq.f32.partialorder %v392, inf
    %v396 = vsel %vm395, %v392, %v394
    %vm397 = vcmp.eq.f32.partialorder %v392, 0.0
    %v398 = vand.u32 %v392, 2147483648
    %v399 = vsel %vm397, %v398, %v396
    %400 = vst.msk [vmem:[#allocation2] sm:$0x3] %vm46, %v399
    %v401 = vld [vmem:[%s7] sm:$0x3]
    %v402 = vmax.f32 %v401, 0.0
    %v403 = vmul.f32 %v401, %v35
    %v404 = vsub.f32 %v402, %v403
    %v405 = vand.u32 2147483647, %v401
    %v406 = vsub.f32 0.0, %v405
    %v407 = vmul.f32 %v406, 1.442695
    %v408 = vpow.pop %v407
    %v409 = vadd.f32 %v408, 1.0
    %v410 = vlog2.pop %v409
    %v411 = vmul.f32 %v410, 0.6931472
    %v412 = vmul.f32 -0.5, %v408
    %v413 = vadd.f32 %v412, 1.0
    %v414 = vmul.f32 %v413, %v408
    %v415 = vand.u32 2147483647, %v408
    %vm416 = vcmp.lt.f32.partialorder %v415, 0.0004427343
    %v417 = vsel %vm416, %v414, %v411
    %v418 = vadd.f32 %v404, %v417
    %v419 = vsel %vm41, %v418, 0.0
    %v420 = vsel %vm46, %v419, 0.0
    %421 = vadd.xlane.f32.xlu0 %v420
    %v422 = vpop.xlane.xlu0 %421
    %v423 = vrot.slane %v422, 4
    %v424 = vadd.f32 %v422, %v423
    %v425 = vrot.slane %v424, 2
    %v426 = vadd.f32 %v424, %v425
    %v427 = vrot.slane %v426, 1
    %v428 = vadd.f32 %v426, %v427
    %s429 = vtos %v428
    %v430 = vadd.f32 %v392, 0.000256
    %v431 = vrsqrt.pop %v430
    %v432 = vmul.f32 %v430, %v431
    %vm433 = vcmp.eq.f32.partialorder %v430, inf
    %v434 = vsel %vm433, %v430, %v432
    %vm435 = vcmp.eq.f32.partialorder %v430, 0.0
    %v436 = vand.u32 %v430, 2147483648
    %v437 = vsel %vm435, %v436, %v434
    %v438 = vsel %vm43, %v437, 0.0
    %v439 = vsel %vm46, %v438, 0.0
    %440 = vadd.xlane.f32.xlu0 %v439
    %v441 = vpop.xlane.xlu0 %440
    %v442 = vrot.slane %v441, 4
    %v443 = vadd.f32 %v441, %v442
    %v444 = vrot.slane %v443, 2
    %v445 = vadd.f32 %v443, %v444
    %v446 = vrot.slane %v445, 1
    %v447 = vadd.f32 %v445, %v446
    %s448 = vtos %v447
    %vm449 = vcmp.eq.s32.totalorder %v227, 0
    %vm450 = vcmp.eq.s32.totalorder %v37, 0
    %vm451 = vmand %vm449, %vm450
    %v452 = vstv %s385
    %v453 = vsel %vm451, %v452, 0.0
    %v454 = vadd.f32 %v453, 0.0
    %vm455 = vcmp.eq.s32.totalorder %v37, 1
    %vm456 = vmand %vm449, %vm455
    %v457 = vstv %s356
    %v458 = vsel %vm456, %v457, 0.0
    %v459 = vadd.f32 %v454, %v458
    %vm460 = vcmp.eq.s32.totalorder %v37, 2
    %vm461 = vmand %vm449, %vm460
    %v462 = vstv %s56
    %v463 = vsel %vm461, %v462, 0.0
    %v464 = vadd.f32 %v459, %v463
    %vm465 = vcmp.eq.s32.totalorder %v37, 3
    %vm466 = vmand %vm449, %vm465
    %v467 = vstv %s429
    %v468 = vsel %vm466, %v467, 0.0
    %v469 = vadd.f32 %v464, %v468
    %vm470 = vcmp.eq.s32.totalorder %v37, 4
    %vm471 = vmand %vm449, %vm470
    %v472 = vstv %s448
    %v473 = vsel %vm471, %v472, 0.0
    %v474 = vadd.f32 %v469, %v473
    %475 = vst [vmem:[#allocation4] sm:$0xff] %v474
    // Predicated region
    $region34: #{tpu_custom_call.1} parent=1 // pred_check
      _
    $region35: #{tpu_custom_call.1} parent=1 // pred_check_branch
      %477 = sbr.rel (0) target = $region37
    $region36: #{tpu_custom_call.1} parent=1 // pred_region
      %s479 = ssub.s32 32, 32
      %480 = vsyncadd [#allocation3], %s479
      %s482 = sshll.u32 [#allocation2], 4
      %s483 = int_to_ptr.vmem [resolvable:$true] %s482
      %485 = dma.vmem_to_hbm [thread:$0]  %s483, 32, %s8, [#allocation3]
    $region37: #{tpu_custom_call.1} parent=1 // pred_fallthru
      _
    // Predicated region
    $region38: #{tpu_custom_call.1} parent=1 // pred_check
      _
    $region39: #{tpu_custom_call.1} parent=1 // pred_check_branch
      %487 = sbr.rel (0) target = $region41
    $region40: #{tpu_custom_call.1} parent=1 // pred_region
      %s489 = ssub.s32 128, 128
      %490 = vsyncadd [#allocation5], %s489
      %s492 = sshll.u32 [#allocation4], 4
      %s493 = int_to_ptr.vmem [resolvable:$true] %s492
      %495 = dma.vmem_to_hbm [thread:$0]  %s493, 128, %s9, [#allocation5]
    $region41: #{tpu_custom_call.1} parent=1 // pred_fallthru
      _
    // Predicated region
    $region42: #{tpu_custom_call.1} parent=1 // pred_check
      _
    $region43: #{tpu_custom_call.1} parent=1 // pred_check_branch
      %497 = sbr.rel (0) target = $region45
    $region44: #{tpu_custom_call.1} parent=1 // pred_region
      %498 = dma.done [#allocation3], 32
    $region45: #{tpu_custom_call.1} parent=1 // pred_fallthru
      _
    // Predicated region
    $region46: #{tpu_custom_call.1} parent=1 // pred_check
      _
    $region47: #{tpu_custom_call.1} parent=1 // pred_check_branch
      %500 = sbr.rel (0) target = $region49
    $region48: #{tpu_custom_call.1} parent=1 // pred_region
      %501 = dma.done [#allocation5], 128
    $region49: #{tpu_custom_call.1} parent=1 // pred_fallthru
      _
    %502 = vsyncpa [#allocation3], 1
    %503 = vsyncpa [#allocation5], 1

</llo_original>
